<compile_context>
chip_gen: v7x
topology: tpu7x:2x2x1
jax: 0.10.0
libtpu: 0.0.40
codegen_flags: <defaults>
</compile_context>

<pallas_src>
import jax
import jax.numpy as jnp
from jax import lax
from jax.experimental import pallas as pl
from jax.experimental.pallas import tpu as pltpu


_LANE = 128
_SUBLANE = 8


def _round_up(n: int, m: int) -> int:
    return (n + m - 1) // m * m


def _linear_comp_kernel(x_ref, y_ref, w_ref, b_ref, o_ref):
    # x_ref : [tm, D]    tile of x
    # y_ref : [tm, D]    tile of y
    # w_ref : [Do, 2D]   weight in native torch layout (out_features, in_features),
    #                    resident across grid steps
    # b_ref : [1, Do]    bias, resident across grid steps
    # o_ref : [tm, Do]
    xy = jnp.concatenate([x_ref[...], y_ref[...]], axis=1)          # [tm, 2D]
    # Single fused K=2D MXU dot; contracting the RHS on dim 1 means the weight
    # is consumed in its native layout (no transpose kernel in the wrapper).
    acc = lax.dot_general(
        xy, w_ref[...],
        dimension_numbers=(((1,), (1,)), ((), ())),
        preferred_element_type=jnp.float32)                          # [tm, Do]
    # f32 epilogue (bias add), single cast at the store.
    o_ref[...] = (acc + b_ref[...].astype(jnp.float32)).astype(o_ref.dtype)


def linear_composition(x, y, weight, bias, *, block_b: int = 2048):
    """LinearComposition forward: Linear(2D -> D)(cat([x, y], dim=1)).

    x, y   : [B, D]
    weight : [D, 2D]   (torch nn.Linear layout: out_features x in_features)
    bias   : [D]
    returns: [B, D]
    """
    B, D = x.shape
    assert y.shape == (B, D)
    assert weight.shape == (D, 2 * D)
    assert bias.shape == (D,)
    out_dtype = x.dtype

    # Dtype-aware sublane granularity (sub-32-bit dtypes pack rows per sublane).
    itemsize = jnp.dtype(x.dtype).itemsize
    sub = _SUBLANE * max(1, 4 // int(itemsize))   # 8 (f32) / 16 (bf16) / 32 (i8)

    # ---- Output-feature padding: only when D is large AND lane-misaligned. ----
    # At small D (e.g. 32) the kernel is HBM-bytes bound; padding 32 -> 128
    # lanes would ~4x the output writeback, so accept masked vst instead.
    pad_feat = (D % _LANE != 0) and (D >= 512)
    if pad_feat:
        Do = _round_up(D, _LANE)
        weight = jnp.pad(weight, ((0, Do - D), (0, 0)))
        bias_2d = jnp.pad(bias, (0, Do - D)).reshape(1, Do)
    else:
        Do = D
        bias_2d = bias.reshape(1, Do)

    # ---- Batch tiling: no input padding. ----
    # Keep >= 2 grid steps when B allows it so ("parallel",) can shard across
    # the 2 TensorCores on v7x; cap the tile at block_b rows. The trailing
    # partial tile (if any) is handled by Pallas boundary masking.
    cap = min(block_b, _round_up(B, sub))
    if B >= 2 * sub:
        cap = min(cap, _round_up(pl.cdiv(B, 2), sub))
    cap = max(sub, (cap // sub) * sub)
    if B <= cap:
        tm = B            # single full-extent tile: no sublane-divisibility needed
    else:
        tm = cap          # multiple of the (packed) sublane count
    grid = (pl.cdiv(B, tm),)

    out = pl.pallas_call(
        _linear_comp_kernel,
        out_shape=jax.ShapeDtypeStruct((B, Do), out_dtype),
        grid=grid,
        in_specs=[
            pl.BlockSpec((tm, D), lambda i: (i, 0)),       # x tile
            pl.BlockSpec((tm, D), lambda i: (i, 0)),       # y tile
            pl.BlockSpec((Do, 2 * D), lambda i: (0, 0)),   # weight (resident)
            pl.BlockSpec((1, Do), lambda i: (0, 0)),       # bias   (resident)
        ],
        out_specs=pl.BlockSpec((tm, Do), lambda i: (i, 0)),
        compiler_params=pltpu.CompilerParams(
            # Batch tiles are independent -> megacore sharding on v7x.
            dimension_semantics=("parallel",),
        ),
    )(x, y, weight, bias_2d)

    if pad_feat:
        out = out[:, :D]
    return out


if __name__ == "__main__":
    # Small shapes consistent with the module: batch=8, representation_size=32.
    B, D = 8, 32

    key = jax.random.PRNGKey(0)
    kx, ky, kw, kb = jax.random.split(key, 4)

    x = jax.random.normal(kx, (B, D), dtype=jnp.float32)
    y = jax.random.normal(ky, (B, D), dtype=jnp.float32)

    # Deterministic parameter init mimicking torch.nn.Linear(2D, D):
    # uniform(-1/sqrt(fan_in), 1/sqrt(fan_in)), fan_in = 2*D.
    bound = 1.0 / jnp.sqrt(jnp.float32(2 * D))
    W = jax.random.uniform(kw, (D, 2 * D), dtype=jnp.float32,
                           minval=-bound, maxval=bound)   # [D, 2D]
    b = jax.random.uniform(kb, (D,), dtype=jnp.float32,
                           minval=-bound, maxval=bound)   # [D]

    out = linear_composition(x, y, W, b)
    out = jax.block_until_ready(out)

    # Reference check (plain JAX, same math as the PyTorch module).
    ref = jnp.concatenate([x, y], axis=1) @ W.T + b
    assert out.shape == (B, D)
    assert jnp.allclose(out, ref, atol=1e-5, rtol=1e-5)

    print("KERNEL_OK")
</pallas_src>

<mosaic_0001>
module attributes {stable_mosaic.version = 11 : i64} {
  func.func @_linear_comp_kernel(%arg0: i32, %arg1: memref<8x32xf32, #tpu.memory_space<vmem>>, %arg2: memref<8x32xf32, #tpu.memory_space<vmem>>, %arg3: memref<32x64xf32, #tpu.memory_space<vmem>>, %arg4: memref<1x32xf32, #tpu.memory_space<vmem>>, %arg5: memref<8x32xf32, #tpu.memory_space<vmem>>) attributes {dimension_semantics = [#tpu.dimension_semantics<parallel>], iteration_bounds = array<i64: 1>, scalar_prefetch = 0 : i64, scratch_operands = 0 : i64, tpu.core_type = #tpu.core_type<tc>, window_params = [{transform_indices = @transform_0, window_bounds = array<i64: 8, 32>}, {transform_indices = @transform_1, window_bounds = array<i64: 8, 32>}, {pipeline_mode = #tpu.pipeline_mode<synchronous>, transform_indices = @transform_2, window_bounds = array<i64: 32, 64>}, {pipeline_mode = #tpu.pipeline_mode<synchronous>, transform_indices = @transform_3, window_bounds = array<i64: 1, 32>}, {transform_indices = @transform_4, window_bounds = array<i64: 8, 32>}]} {
    %c0 = arith.constant 0 : index
    %c0_0 = arith.constant 0 : index
    %0 = vector.load %arg1[%c0, %c0_0] : memref<8x32xf32, #tpu.memory_space<vmem>>, vector<8x32xf32>
    %c0_1 = arith.constant 0 : index
    %c0_2 = arith.constant 0 : index
    %1 = vector.load %arg2[%c0_1, %c0_2] : memref<8x32xf32, #tpu.memory_space<vmem>>, vector<8x32xf32>
    %2 = tpu.concatenate %0, %1 in 1 : vector<8x32xf32>, vector<8x32xf32> -> vector<8x64xf32>
    %c0_3 = arith.constant 0 : index
    %c0_4 = arith.constant 0 : index
    %3 = vector.load %arg3[%c0_3, %c0_4] : memref<32x64xf32, #tpu.memory_space<vmem>>, vector<32x64xf32>
    %cst = arith.constant dense<0.000000e+00> : vector<8x32xf32>
    %4 = tpu.matmul %2, %3, %cst {dimension_numbers = #tpu.dot_dimension_numbers<[1], [1], [0], [0], [0, 0, 1, 0], [], []>} : vector<8x64xf32>, vector<32x64xf32>, vector<8x32xf32> -> vector<8x32xf32>
    %c0_5 = arith.constant 0 : index
    %c0_6 = arith.constant 0 : index
    %5 = vector.load %arg4[%c0_5, %c0_6] : memref<1x32xf32, #tpu.memory_space<vmem>>, vector<1x32xf32>
    %6 = vector.broadcast %5 : vector<1x32xf32> to vector<8x32xf32>
    %7 = arith.addf %4, %6 : vector<8x32xf32>
    %c0_7 = arith.constant 0 : index
    %c0_8 = arith.constant 0 : index
    %8 = vector.load %arg5[%c0_7, %c0_8] : memref<8x32xf32, #tpu.memory_space<vmem>>, vector<8x32xf32>
    tpu.vector_store %arg5[%c0_7, %c0_8], %7 {strides = array<i32>} : memref<8x32xf32, #tpu.memory_space<vmem>>, vector<8x32xf32>,
    return
  }
  func.func @transform_0(%arg0: i32) -> (i32, i32) {
    %c0_i32 = arith.constant 0 : i32
    %c0_i32_0 = arith.constant 0 : i32
    return %arg0, %c0_i32 : i32, i32
  }
  func.func @transform_1(%arg0: i32) -> (i32, i32) {
    %c0_i32 = arith.constant 0 : i32
    %c0_i32_0 = arith.constant 0 : i32
    return %arg0, %c0_i32 : i32, i32
  }
  func.func @transform_2(%arg0: i32) -> (i32, i32) {
    %c0_i32 = arith.constant 0 : i32
    %c0_i32_0 = arith.constant 0 : i32
    %c0_i32_1 = arith.constant 0 : i32
    return %c0_i32, %c0_i32_0 : i32, i32
  }
  func.func @transform_3(%arg0: i32) -> (i32, i32) {
    %c0_i32 = arith.constant 0 : i32
    %c0_i32_0 = arith.constant 0 : i32
    %c0_i32_1 = arith.constant 0 : i32
    return %c0_i32, %c0_i32_0 : i32, i32
  }
  func.func @transform_4(%arg0: i32) -> (i32, i32) {
    %c0_i32 = arith.constant 0 : i32
    %c0_i32_0 = arith.constant 0 : i32
    return %arg0, %c0_i32 : i32, i32
  }
}

</mosaic_0001>

<llo_original>
// kernel: tpu_custom_call.1
$region0: #{tpu_custom_call.1}
  #allocation0 [shape = 'u32[]', space=smem, size = 0x4, offset = 0x4, fixed_abs, tag = 'smem constant byte address 0x4 - core index']
  #allocation1 [shape = 'u32[144,128]{1,0:T(1,128)}', space=vmem, size = 0x12000, scoped, tag = 'internal scratch']
  %s0 = inlined_call_operand.hbm [shape: f32[8,32], index: 0, kind: input, shape index: {}]
  %s1 = inlined_call_operand.hbm [shape: f32[8,32], index: 1, kind: input, shape index: {}]
  %s2 = inlined_call_operand.hbm [shape: f32[32,64], index: 2, kind: input, shape index: {}]
  %s3 = inlined_call_operand.vmem [shape: f32[1,32], index: 3, kind: input, shape index: {}]
  %s4 = inlined_call_operand.hbm [shape: f32[8,32], index: 4, kind: output, shape index: {}]
  %s5 = sld [smem:[#allocation0]]
  $region38: #{tpu_custom_call.1} parent=0
    _
  %s7 = ssub.s32 1, %s5
  %s8 = scalar_select 0, %s7, %s5
  $region1: #{tpu_custom_call.1} parent=0
    #allocation2 [shape = 'u8[4096]{0}', space=vmem, size = 0x1000, scoped, tag = 'input window, operand 0, single buffered']
    #allocation3 [shape = 's32[1]{0}', space=sflag, size = 0x4, scoped, tag = 'scoped memory for tpu_custom_call.1']
    #allocation4 [shape = 's32[1]{0}', space=sflag, size = 0x4, scoped, tag = 'scoped memory for tpu_custom_call.1']
    #allocation5 [shape = 'u8[4096]{0}', space=vmem, size = 0x1000, scoped, tag = 'input window, operand 1, single buffered']
    #allocation6 [shape = 's32[1]{0}', space=sflag, size = 0x4, scoped, tag = 'scoped memory for tpu_custom_call.1']
    #allocation7 [shape = 'u8[16384]{0}', space=vmem, size = 0x4000, scoped, tag = 'input window, operand 2, single buffered']
    #allocation8 [shape = 'u8[4096]{0}', space=vmem, size = 0x1000, scoped, tag = 'output window, operand 0, single buffered']
    %9 = vsyncpa [#allocation3], 0
    %10 = vsyncpa [#allocation6], 0
    %11 = vsyncpa [#allocation4], 0
    // Predicated region
    $region2: #{tpu_custom_call.1} parent=1 // pred_check
      _
    $region3: #{tpu_custom_call.1} parent=1 // pred_check_branch
      %13 = sbr.rel (0) target = $region5
    $region4: #{tpu_custom_call.1} parent=1 // pred_region
      %s15 = ssub.s32 128, 128
      %16 = vsyncadd [#allocation3], %s15
      %s18 = sshll.u32 [#allocation2], 4
      %s19 = int_to_ptr.vmem [resolvable:$true] %s18
      %21 = dma.hbm_to_vmem [thread:$0]  %s0, 128, %s19, [#allocation3]
    $region5: #{tpu_custom_call.1} parent=1 // pred_fallthru
      _
    // Predicated region
    $region6: #{tpu_custom_call.1} parent=1 // pred_check
      _
    $region7: #{tpu_custom_call.1} parent=1 // pred_check_branch
      %23 = sbr.rel (0) target = $region9
    $region8: #{tpu_custom_call.1} parent=1 // pred_region
      %s25 = ssub.s32 128, 128
      %26 = vsyncadd [#allocation6], %s25
      %s28 = sshll.u32 [#allocation5], 4
      %s29 = int_to_ptr.vmem [resolvable:$true] %s28
      %31 = dma.hbm_to_vmem [thread:$0]  %s1, 128, %s29, [#allocation6]
    $region9: #{tpu_custom_call.1} parent=1 // pred_fallthru
      _
    // Predicated region
    $region10: #{tpu_custom_call.1} parent=1 // pred_check
      _
    $region11: #{tpu_custom_call.1} parent=1 // pred_check_branch
      %33 = sbr.rel (0) target = $region13
    $region12: #{tpu_custom_call.1} parent=1 // pred_region
      %s35 = ssub.s32 512, 512
      %36 = vsyncadd [#allocation6], %s35
      %s37 = sshll.u32 [#allocation7], 4
      %s38 = int_to_ptr.vmem [resolvable:$true] %s37
      %43 = dma.hbm_to_vmem [thread:$0]  %s2, 512, %s38, [#allocation6], 128, 128, 8
    $region13: #{tpu_custom_call.1} parent=1 // pred_fallthru
      _
    // Predicated region
    $region14: #{tpu_custom_call.1} parent=1 // pred_check
      _
    $region15: #{tpu_custom_call.1} parent=1 // pred_check_branch
      %45 = sbr.rel (0) target = $region17
    $region16: #{tpu_custom_call.1} parent=1 // pred_region
      _
    $region17: #{tpu_custom_call.1} parent=1 // pred_fallthru
      _
    // Predicated region
    $region18: #{tpu_custom_call.1} parent=1 // pred_check
      _
    $region19: #{tpu_custom_call.1} parent=1 // pred_check_branch
      %47 = sbr.rel (0) target = $region21
    $region20: #{tpu_custom_call.1} parent=1 // pred_region
      %48 = dma.done [#allocation3], 128
    $region21: #{tpu_custom_call.1} parent=1 // pred_fallthru
      _
    // Predicated region
    $region22: #{tpu_custom_call.1} parent=1 // pred_check
      _
    $region23: #{tpu_custom_call.1} parent=1 // pred_check_branch
      %50 = sbr.rel (0) target = $region25
    $region24: #{tpu_custom_call.1} parent=1 // pred_region
      %51 = dma.done [#allocation6], 128
    $region25: #{tpu_custom_call.1} parent=1 // pred_fallthru
      _
    // Predicated region
    $region26: #{tpu_custom_call.1} parent=1 // pred_check
      _
    $region27: #{tpu_custom_call.1} parent=1 // pred_check_branch
      %53 = sbr.rel (0) target = $region29
    $region28: #{tpu_custom_call.1} parent=1 // pred_region
      %54 = dma.done [#allocation6], 512
    $region29: #{tpu_custom_call.1} parent=1 // pred_fallthru
      _
    %v55 = vld [vmem:[#allocation2] sm:$0xff]
    %v56 = vld [vmem:[#allocation5] sm:$0xff]
    %58 = vrot.lane.b32.xlu0 %v56, 32
    %v59 = vpop.permute.xlu0 %58
    %vm61 = vcmask 261120
    %v62 = vsel %vm61, %v55, %v59
    %v63 = vld [vmem:[#allocation7] sm:$0xff]
    %v64 = vld [vmem:[#allocation7 + $0x8] sm:$0xff]
    %v65 = vld [vmem:[#allocation7 + $0x10] sm:$0xff]
    %v66 = vld [vmem:[#allocation7 + $0x18] sm:$0xff]
    %v67 = vld [vmem:[%s3] sm:$0x1]
    %v69 = vlaneseq
    %v70 = vshrl.u32 %v69, 7
    %v71 = vsub.s32 0, %v70
    %v72 = vrot.slane %v67, %v71
    %vm74 = vcmask 523264
    %v76 = vsel %vm74, %v62, 0
    %v79 = vsel %vm74, %v63, 0
    %v82 = vsel %vm74, %v64, 0
    %v85 = vsel %vm74, %v65, 0
    %v88 = vsel %vm74, %v66, 0
    %90 = vmatprep.subr.mxu0 0.0
    %91 = vmatpush1.xpose.msra.mxu0 %v79
    %92 = vmatprep.subr.mxu0 0.0
    %93 = vmatpush1.xpose.msra.mxu0 %v82
    %94 = vmatprep.subr.mxu0 0.0
    %95 = vmatpush1.xpose.msra.mxu0 %v85
    %96 = vmatprep.subr.mxu0 0.0
    %97 = vmatpush1.xpose.msra.mxu0 %v88
    %98 = vmatprep.subr.mxu0 0.0
    %99 = vmatpush1.xpose.msra.mxu0 0.0
    %100 = vmatprep.subr.mxu0 0.0
    %101 = vmatpush1.xpose.msra.mxu0 0.0
    %102 = vmatprep.subr.mxu0 0.0
    %103 = vmatpush1.xpose.msra.mxu0 0.0
    %104 = vmatprep.subr.mxu0 0.0
    %105 = vmatpush1.xpose.msra.mxu0 0.0
    %106 = vmatprep.subr.mxu0 0.0
    %107 = vmatpush1.xpose.msra.mxu0 0.0
    %108 = vmatprep.subr.mxu0 0.0
    %109 = vmatpush1.xpose.msra.mxu0 0.0
    %110 = vmatprep.subr.mxu0 0.0
    %111 = vmatpush1.xpose.msra.mxu0 0.0
    %112 = vmatprep.subr.mxu0 0.0
    %113 = vmatpush1.xpose.msra.mxu0 0.0
    %114 = vmatprep.subr.mxu0 0.0
    %115 = vmatpush1.xpose.msra.mxu0 0.0
    %116 = vmatprep.subr.mxu0 0.0
    %117 = vmatpush1.xpose.msra.mxu0 0.0
    %118 = vmatprep.subr.mxu0 0.0
    %119 = vmatpush1.xpose.msra.mxu0 0.0
    %120 = vmatprep.subr.mxu0 0.0
    %121 = vmatpush1.xpose.msra.mxu0 0.0
    %122 = vmatprep.subr.mxu0 0.0
    %123 = vmatpush1.xpose.msra.mxu0 0.0
    %124 = vmatprep.subr.mxu0 0.0
    %125 = vmatpush1.xpose.msra.mxu0 0.0
    %126 = vmatprep.subr.mxu0 0.0
    %127 = vmatpush1.xpose.msra.mxu0 0.0
    %128 = vmatprep.subr.mxu0 0.0
    %129 = vmatpush1.xpose.msra.mxu0 0.0
    %130 = vmatprep.subr.mxu0 0.0
    %131 = vmatpush1.xpose.msra.mxu0 0.0
    %132 = vmatprep.subr.mxu0 0.0
    %133 = vmatpush1.xpose.msra.mxu0 0.0
    %134 = vmatprep.subr.mxu0 0.0
    %135 = vmatpush1.xpose.msra.mxu0 0.0
    %136 = vmatprep.subr.mxu0 0.0
    %137 = vmatpush1.xpose.msra.mxu0 0.0
    %138 = vmatprep.subr.mxu0 0.0
    %139 = vmatpush1.xpose.msra.mxu0 0.0
    %140 = vmatprep.subr.mxu0 0.0
    %141 = vmatpush1.xpose.msra.mxu0 0.0
    %142 = vmatprep.subr.mxu0 0.0
    %143 = vmatpush1.xpose.msra.mxu0 0.0
    %144 = vmatprep.subr.mxu0 0.0
    %145 = vmatpush1.xpose.msra.mxu0 0.0
    %146 = vmatprep.subr.mxu0 0.0
    %147 = vmatpush1.xpose.msra.mxu0 0.0
    %148 = vmatprep.subr.mxu0 0.0
    %149 = vmatpush1.xpose.msra.mxu0 0.0
    %150 = vmatprep.subr.mxu0 0.0
    %151 = vmatpush1.xpose.msra.mxu0 0.0
    %152 = vmatprep.subr.mxu0 0.0
    %153 = vmatpush1.xpose.msra.mxu0 0.0
    %154 = vmatprep.mubr.f32.mxu0 0.0
    %155 = vmatmul.mubr.f32.gmra.mrb[0].mxu0 %v76
    %v156 = vpop.f32.mrb[0].mxu0
    %v157 = vadd.f32 %v72, %v156
    %v158 = vpop.f32.mrb[0].mxu0
    %159 = vdwg.mxu0
    %160 = vst.msk [vmem:[#allocation8] sm:$0xff] %vm61, %v157
    // Predicated region
    $region30: #{tpu_custom_call.1} parent=1 // pred_check
      _
    $region31: #{tpu_custom_call.1} parent=1 // pred_check_branch
      %162 = sbr.rel (0) target = $region33
    $region32: #{tpu_custom_call.1} parent=1 // pred_region
      %s164 = ssub.s32 128, 128
      %165 = vsyncadd [#allocation4], %s164
      %s167 = sshll.u32 [#allocation8], 4
      %s168 = int_to_ptr.vmem [resolvable:$true] %s167
      %170 = dma.vmem_to_hbm [thread:$0]  %s168, 128, %s4, [#allocation4]
    $region33: #{tpu_custom_call.1} parent=1 // pred_fallthru
      _
    // Predicated region
    $region34: #{tpu_custom_call.1} parent=1 // pred_check
      _
    $region35: #{tpu_custom_call.1} parent=1 // pred_check_branch
      %172 = sbr.rel (0) target = $region37
    $region36: #{tpu_custom_call.1} parent=1 // pred_region
      %173 = dma.done [#allocation4], 128
    $region37: #{tpu_custom_call.1} parent=1 // pred_fallthru
      _
    %174 = vsyncpa [#allocation3], 1
    %175 = vsyncpa [#allocation6], 1
    %176 = vsyncpa [#allocation4], 1

</llo_original>
